<compile_context>
chip_gen: v5e
topology: v5e:2x2
jax: 0.10.0
libtpu: 0.0.40
codegen_flags: <defaults>
</compile_context>

<pallas_src>
import jax
import jax.numpy as jnp
from jax import lax
from jax.experimental import pallas as pl
from jax.experimental.pallas import tpu as pltpu


def reinforce_kernel(state_ref, ht_ref, w2_ref, b2_ref, out_ref):
    # state_ref: (TB, 1) int32 indices
    ids = state_ref[...]                                   # (TB, 1)
    tb = ids.shape[0]
    s_pad = ht_ref.shape[0]                                # n_states padded to 128k

    # Gather of the folded (Embedding + Linear1) table as a one-hot matmul
    # (exact selection on the MXU), then ReLU.  Padded table rows are zero,
    # so the padding never contributes.
    iota = lax.broadcasted_iota(jnp.int32, (tb, s_pad), 1)
    onehot = (iota == ids).astype(jnp.float32)             # (TB, S_pad) lane-dense
    h = jnp.dot(onehot, ht_ref[...], preferred_element_type=jnp.float32)
    h = jnp.maximum(h, 0.0)                                # (TB, 128) ReLU (cheap VALU)

    # Linear(128, A_pad): padded head. Pad lanes carry bias -1e30 -> exp == 0,
    # so max/sum over all 128 lanes equal the unpadded softmax statistics.
    logits = jnp.dot(h, w2_ref[...], preferred_element_type=jnp.float32) + b2_ref[...]

    m = jnp.max(logits, axis=-1, keepdims=True)
    e = jnp.exp(logits - m)                                # EUP
    s = jnp.sum(e, axis=-1, keepdims=True)                 # XLU reduce
    out_ref[...] = e * pl.reciprocal(s, approx=False)      # lane-dense (TB, 128) store


def net_reinforce_forward(state, emb, w1, b1, w2, b2, *, max_tb=128):
    """state: (B,) int indices; returns (B, n_actions) float32 softmax probs."""
    B = state.shape[0]
    n_states, _E = emb.shape
    H = w1.shape[1]
    n_actions = w2.shape[1]

    # --- fold Embedding + Linear1 into one per-state table (mathematically exact)
    h_table = (emb @ w1 + b1[None, :]).astype(jnp.float32)          # (n_states, H)

    # --- pad the gather/contraction dim (states) to a multiple of 128:
    #     lane-dense one-hot, full-width MXU contraction; pad rows are zero.
    S_pad = max(128, ((n_states + 127) // 128) * 128)
    h_table_pad = jnp.zeros((S_pad, H), jnp.float32).at[:n_states, :].set(h_table)

    # --- lane-dense action head: pad output features to a multiple of 128
    A_pad = max(128, ((n_actions + 127) // 128) * 128)
    w2_pad = jnp.zeros((H, A_pad), jnp.float32).at[:, :n_actions].set(w2)
    b2_pad = jnp.full((1, A_pad), -1e30, jnp.float32).at[0, :n_actions].set(b2)

    # --- batch tiling: TB multiple of 8 (f32 sublane), grid over batch
    TB = min(max_tb, ((B + 7) // 8) * 8)
    TB = ((TB + 7) // 8) * 8
    B_pad = ((B + TB - 1) // TB) * TB
    state2d = jnp.zeros((B_pad, 1), jnp.int32).at[:B, 0].set(state.astype(jnp.int32))

    grid = (B_pad // TB,)
    out = pl.pallas_call(
        reinforce_kernel,
        out_shape=jax.ShapeDtypeStruct((B_pad, A_pad), jnp.float32),
        grid=grid,
        in_specs=[
            pl.BlockSpec((TB, 1), lambda i: (i, 0)),                 # state ids
            pl.BlockSpec((S_pad, H), lambda i: (0, 0)),              # folded table (resident)
            pl.BlockSpec((H, A_pad), lambda i: (0, 0)),              # padded W2 (resident)
            pl.BlockSpec((1, A_pad), lambda i: (0, 0)),              # padded b2 (resident)
        ],
        out_specs=pl.BlockSpec((TB, A_pad), lambda i: (i, 0)),
        compiler_params=pltpu.CompilerParams(
            dimension_semantics=("parallel",)),                      # shards across TCs on v7x
    )(state2d, h_table_pad, w2_pad, b2_pad)

    return out[:B, :n_actions]


def reference_forward(state, emb, w1, b1, w2, b2):
    x = emb[state]                                   # (B, E)
    h = jnp.maximum(x @ w1 + b1, 0.0)                # (B, 128)
    logits = h @ w2 + b2                             # (B, A)
    return jax.nn.softmax(logits, axis=-1)


if __name__ == "__main__":
    # Small, module-consistent shapes.
    n_states, n_actions, embedding_size = 16, 8, 32
    hidden = 128
    batch = 8

    key = jax.random.PRNGKey(0)
    k_emb, k_w1, k_b1, k_w2, k_b2, k_state = jax.random.split(key, 6)

    # Deterministic parameter init (shapes match nn.Embedding / nn.Linear,
    # Linear weights stored transposed: (in_features, out_features)).
    emb = jax.random.normal(k_emb, (n_states, embedding_size), jnp.float32)
    bound1 = 1.0 / jnp.sqrt(embedding_size)
    w1 = jax.random.uniform(k_w1, (embedding_size, hidden), jnp.float32, -bound1, bound1)
    b1 = jax.random.uniform(k_b1, (hidden,), jnp.float32, -bound1, bound1)
    bound2 = 1.0 / jnp.sqrt(hidden)
    w2 = jax.random.uniform(k_w2, (hidden, n_actions), jnp.float32, -bound2, bound2)
    b2 = jax.random.uniform(k_b2, (n_actions,), jnp.float32, -bound2, bound2)

    state = jax.random.randint(k_state, (batch,), 0, n_states, jnp.int32)

    out = net_reinforce_forward(state, emb, w1, b1, w2, b2)
    out = jax.block_until_ready(out)

    ref = reference_forward(state, emb, w1, b1, w2, b2)
    assert out.shape == (batch, n_actions)
    assert jnp.allclose(out, ref, atol=1e-5, rtol=1e-5)
    assert jnp.allclose(jnp.sum(out, axis=-1), 1.0, atol=1e-5)

    print("KERNEL_OK")
</pallas_src>

<mosaic_0001>
module attributes {stable_mosaic.version = 11 : i64} {
  func.func @reinforce_kernel(%arg0: i32, %arg1: memref<8x1xi32, #tpu.memory_space<vmem>>, %arg2: memref<128x128xf32, #tpu.memory_space<vmem>>, %arg3: memref<128x128xf32, #tpu.memory_space<vmem>>, %arg4: memref<1x128xf32, #tpu.memory_space<vmem>>, %arg5: memref<8x128xf32, #tpu.memory_space<vmem>>) attributes {dimension_semantics = [#tpu.dimension_semantics<parallel>], iteration_bounds = array<i64: 1>, scalar_prefetch = 0 : i64, scratch_operands = 0 : i64, tpu.core_type = #tpu.core_type<tc>, window_params = [{transform_indices = @transform_0, window_bounds = array<i64: 8, 1>}, {pipeline_mode = #tpu.pipeline_mode<synchronous>, transform_indices = @transform_1, window_bounds = array<i64: 128, 128>}, {pipeline_mode = #tpu.pipeline_mode<synchronous>, transform_indices = @transform_2, window_bounds = array<i64: 128, 128>}, {pipeline_mode = #tpu.pipeline_mode<synchronous>, transform_indices = @transform_3, window_bounds = array<i64: 1, 128>}, {transform_indices = @transform_4, window_bounds = array<i64: 8, 128>}]} {
    %c0 = arith.constant 0 : index
    %c0_0 = arith.constant 0 : index
    %0 = vector.load %arg1[%c0, %c0_0] : memref<8x1xi32, #tpu.memory_space<vmem>>, vector<8x1xi32>
    %1 = tpu.iota {dimensions = array<i32: 1>} : vector<8x128xi32>
    %2 = vector.broadcast %0 : vector<8x1xi32> to vector<8x128xi32>
    %3 = arith.cmpi eq, %1, %2 : vector<8x128xi32>
    %4 = arith.extui %3 : vector<8x128xi1> to vector<8x128xi32>
    %5 = arith.sitofp %4 : vector<8x128xi32> to vector<8x128xf32>
    %c0_1 = arith.constant 0 : index
    %c0_2 = arith.constant 0 : index
    %6 = vector.load %arg2[%c0_1, %c0_2] : memref<128x128xf32, #tpu.memory_space<vmem>>, vector<128x128xf32>
    %cst = arith.constant dense<0.000000e+00> : vector<8x128xf32>
    %7 = tpu.matmul %5, %6, %cst {dimension_numbers = #tpu.dot_dimension_numbers<[1], [0], [0], [1], [0, 0, 1, 1], [], []>} : vector<8x128xf32>, vector<128x128xf32>, vector<8x128xf32> -> vector<8x128xf32>
    %cst_3 = arith.constant 0.000000e+00 : f32
    %8 = vector.broadcast %cst_3 : f32 to vector<8x128xf32>
    %9 = arith.maximumf %7, %8 : vector<8x128xf32>
    %c0_4 = arith.constant 0 : index
    %c0_5 = arith.constant 0 : index
    %10 = vector.load %arg3[%c0_4, %c0_5] : memref<128x128xf32, #tpu.memory_space<vmem>>, vector<128x128xf32>
    %cst_6 = arith.constant dense<0.000000e+00> : vector<8x128xf32>
    %11 = tpu.matmul %9, %10, %cst_6 {dimension_numbers = #tpu.dot_dimension_numbers<[1], [0], [0], [1], [0, 0, 1, 1], [], []>} : vector<8x128xf32>, vector<128x128xf32>, vector<8x128xf32> -> vector<8x128xf32>
    %c0_7 = arith.constant 0 : index
    %c0_8 = arith.constant 0 : index
    %12 = vector.load %arg4[%c0_7, %c0_8] : memref<1x128xf32, #tpu.memory_space<vmem>>, vector<1x128xf32>
    %13 = vector.broadcast %12 : vector<1x128xf32> to vector<8x128xf32>
    %14 = arith.addf %11, %13 : vector<8x128xf32>
    %cst_9 = arith.constant dense<0xFF800000> : vector<8xf32>
    %15 = vector.multi_reduction <maximumf>, %14, %cst_9 [1] : vector<8x128xf32> to vector<8xf32>
    %16 = vector.shape_cast %15 : vector<8xf32> to vector<8x1xf32>
    %17 = vector.broadcast %16 : vector<8x1xf32> to vector<8x128xf32>
    %18 = arith.subf %14, %17 : vector<8x128xf32>
    %19 = math.exp %18 : vector<8x128xf32>
    %cst_10 = arith.constant dense<0.000000e+00> : vector<8xf32>
    %20 = vector.multi_reduction <add>, %19, %cst_10 [1] : vector<8x128xf32> to vector<8xf32>
    %21 = vector.shape_cast %20 : vector<8xf32> to vector<8x1xf32>
    %22 = tpu.reciprocal %21 : vector<8x1xf32> -> vector<8x1xf32>
    %23 = vector.broadcast %22 : vector<8x1xf32> to vector<8x128xf32>
    %24 = arith.mulf %19, %23 : vector<8x128xf32>
    %c0_11 = arith.constant 0 : index
    %c0_12 = arith.constant 0 : index
    %25 = vector.load %arg5[%c0_11, %c0_12] : memref<8x128xf32, #tpu.memory_space<vmem>>, vector<8x128xf32>
    tpu.vector_store %arg5[%c0_11, %c0_12], %24 {strides = array<i32>} : memref<8x128xf32, #tpu.memory_space<vmem>>, vector<8x128xf32>,
    return
  }
  func.func @transform_0(%arg0: i32) -> (i32, i32) {
    %c0_i32 = arith.constant 0 : i32
    %c0_i32_0 = arith.constant 0 : i32
    return %arg0, %c0_i32 : i32, i32
  }
  func.func @transform_1(%arg0: i32) -> (i32, i32) {
    %c0_i32 = arith.constant 0 : i32
    %c0_i32_0 = arith.constant 0 : i32
    %c0_i32_1 = arith.constant 0 : i32
    return %c0_i32, %c0_i32_0 : i32, i32
  }
  func.func @transform_2(%arg0: i32) -> (i32, i32) {
    %c0_i32 = arith.constant 0 : i32
    %c0_i32_0 = arith.constant 0 : i32
    %c0_i32_1 = arith.constant 0 : i32
    return %c0_i32, %c0_i32_0 : i32, i32
  }
  func.func @transform_3(%arg0: i32) -> (i32, i32) {
    %c0_i32 = arith.constant 0 : i32
    %c0_i32_0 = arith.constant 0 : i32
    %c0_i32_1 = arith.constant 0 : i32
    return %c0_i32, %c0_i32_0 : i32, i32
  }
  func.func @transform_4(%arg0: i32) -> (i32, i32) {
    %c0_i32 = arith.constant 0 : i32
    %c0_i32_0 = arith.constant 0 : i32
    return %arg0, %c0_i32 : i32, i32
  }
}

</mosaic_0001>

<llo_original>
// kernel: tpu_custom_call.1
$region0: #{tpu_custom_call.1}
  #allocation0 [shape = 'u32[]', space=smem, size = 0x4, offset = 0x4, fixed_abs, tag = 'smem constant byte address 0x4 - core index']
  #allocation1 [shape = 'u32[72,128]{1,0:T(1,128)}', space=vmem, size = 0x9000, scoped, tag = 'internal scratch']
  %s0 = inlined_call_operand.vmem [shape: s32[8,1], index: 0, kind: input, shape index: {}]
  %s1 = inlined_call_operand.hbm [shape: f32[128,128], index: 1, kind: input, shape index: {}]
  %s2 = inlined_call_operand.hbm [shape: f32[128,128], index: 2, kind: input, shape index: {}]
  %s3 = inlined_call_operand.vmem [shape: f32[1,128], index: 3, kind: input, shape index: {}]
  %s4 = inlined_call_operand.hbm [shape: f32[8,128], index: 4, kind: output, shape index: {}]
  %s5 = sld [smem:[#allocation0]]
  $region34: #{tpu_custom_call.1} parent=0
    _
  %s7 = ssub.s32 1, %s5
  %s8 = scalar_select 0, %s7, %s5
  $region1: #{tpu_custom_call.1} parent=0
    #allocation2 [shape = 'u8[65536]{0}', space=vmem, size = 0x10000, scoped, tag = 'input window, operand 1, single buffered']
    #allocation3 [shape = 's32[1]{0}', space=sflag, size = 0x4, scoped, tag = 'scoped memory for tpu_custom_call.1']
    #allocation4 [shape = 's32[1]{0}', space=sflag, size = 0x4, scoped, tag = 'scoped memory for tpu_custom_call.1']
    #allocation5 [shape = 'u8[65536]{0}', space=vmem, size = 0x10000, scoped, tag = 'input window, operand 2, single buffered']
    #allocation6 [shape = 's32[1]{0}', space=sflag, size = 0x4, scoped, tag = 'scoped memory for tpu_custom_call.1']
    #allocation7 [shape = 'u8[4096]{0}', space=vmem, size = 0x1000, scoped, tag = 'output window, operand 0, single buffered']
    %9 = vsyncpa [#allocation3], 0
    %10 = vsyncpa [#allocation6], 0
    %11 = vsyncpa [#allocation4], 0
    // Predicated region
    $region2: #{tpu_custom_call.1} parent=1 // pred_check
      _
    $region3: #{tpu_custom_call.1} parent=1 // pred_check_branch
      %13 = sbr.rel (0) target = $region5
    $region4: #{tpu_custom_call.1} parent=1 // pred_region
      _
    $region5: #{tpu_custom_call.1} parent=1 // pred_fallthru
      _
    // Predicated region
    $region6: #{tpu_custom_call.1} parent=1 // pred_check
      _
    $region7: #{tpu_custom_call.1} parent=1 // pred_check_branch
      %15 = sbr.rel (0) target = $region9
    $region8: #{tpu_custom_call.1} parent=1 // pred_region
      %17 = vsyncadd [#allocation3], 0
      %s18 = sshll.u32 %s1, 4
      %s19 = int_to_ptr.hbm [resolvable:$true] %s18
      %s20 = sshll.u32 [#allocation2], 4
      %s21 = int_to_ptr.vmem [resolvable:$true] %s20
      %26 = dma.hbm_to_vmem [thread:$0]  %s19, 2048, %s21, [#allocation3], 128, 128, 8
    $region9: #{tpu_custom_call.1} parent=1 // pred_fallthru
      _
    // Predicated region
    $region10: #{tpu_custom_call.1} parent=1 // pred_check
      _
    $region11: #{tpu_custom_call.1} parent=1 // pred_check_branch
      %28 = sbr.rel (0) target = $region13
    $region12: #{tpu_custom_call.1} parent=1 // pred_region
      %30 = vsyncadd [#allocation6], 0
      %s31 = sshll.u32 %s2, 4
      %s32 = int_to_ptr.hbm [resolvable:$true] %s31
      %s33 = sshll.u32 [#allocation5], 4
      %s34 = int_to_ptr.vmem [resolvable:$true] %s33
      %39 = dma.hbm_to_vmem [thread:$0]  %s32, 2048, %s34, [#allocation6], 128, 128, 8
    $region13: #{tpu_custom_call.1} parent=1 // pred_fallthru
      _
    // Predicated region
    $region14: #{tpu_custom_call.1} parent=1 // pred_check
      _
    $region15: #{tpu_custom_call.1} parent=1 // pred_check_branch
      %41 = sbr.rel (0) target = $region17
    $region16: #{tpu_custom_call.1} parent=1 // pred_region
      _
    $region17: #{tpu_custom_call.1} parent=1 // pred_fallthru
      _
    // Predicated region
    $region18: #{tpu_custom_call.1} parent=1 // pred_check
      _
    $region19: #{tpu_custom_call.1} parent=1 // pred_check_branch
      %43 = sbr.rel (0) target = $region21
    $region20: #{tpu_custom_call.1} parent=1 // pred_region
      %45 = dma.done [#allocation3], 2048
    $region21: #{tpu_custom_call.1} parent=1 // pred_fallthru
      _
    // Predicated region
    $region22: #{tpu_custom_call.1} parent=1 // pred_check
      _
    $region23: #{tpu_custom_call.1} parent=1 // pred_check_branch
      %47 = sbr.rel (0) target = $region25
    $region24: #{tpu_custom_call.1} parent=1 // pred_region
      %49 = dma.done [#allocation6], 2048
    $region25: #{tpu_custom_call.1} parent=1 // pred_fallthru
      _
    %v50 = vld [vmem:[%s0] sm:$0xff]
    %v51 = vlaneseq
    %v52 = vand.u32 %v51, 127
    %53 = vset.pattern.permute.xlu0 0
    %54 = vperm.xlu0 %53, %v50
    %v55 = vpop.permute.xlu0 %54
    %vm56 = vcmp.eq.s32.totalorder %v52, %v55
    %v57 = vsel %vm56, 1, 0
    %v58 = vcvt.s32.f32 %v57
    %v59 = vld [vmem:[#allocation2] sm:$0xff]
    %v60 = vld [vmem:[#allocation2 + $0x8] sm:$0xff]
    %v61 = vld [vmem:[#allocation2 + $0x10] sm:$0xff]
    %v62 = vld [vmem:[#allocation2 + $0x18] sm:$0xff]
    %v63 = vld [vmem:[#allocation2 + $0x20] sm:$0xff]
    %v64 = vld [vmem:[#allocation2 + $0x28] sm:$0xff]
    %v65 = vld [vmem:[#allocation2 + $0x30] sm:$0xff]
    %v66 = vld [vmem:[#allocation2 + $0x38] sm:$0xff]
    %v67 = vld [vmem:[#allocation2 + $0x40] sm:$0xff]
    %v68 = vld [vmem:[#allocation2 + $0x48] sm:$0xff]
    %v69 = vld [vmem:[#allocation2 + $0x50] sm:$0xff]
    %v70 = vld [vmem:[#allocation2 + $0x58] sm:$0xff]
    %v71 = vld [vmem:[#allocation2 + $0x60] sm:$0xff]
    %v72 = vld [vmem:[#allocation2 + $0x68] sm:$0xff]
    %v73 = vld [vmem:[#allocation2 + $0x70] sm:$0xff]
    %v74 = vld [vmem:[#allocation2 + $0x78] sm:$0xff]
    %75 = vmatpush.msra.mxu0 %v74
    %76 = vmatpush.msra.mxu0 %v73
    %77 = vmatpush.msra.mxu0 %v72
    %78 = vmatpush.msra.mxu0 %v71
    %79 = vmatpush.msra.mxu0 %v70
    %80 = vmatpush.msra.mxu0 %v69
    %81 = vmatpush.msra.mxu0 %v68
    %82 = vmatpush.msra.mxu0 %v67
    %83 = vmatpush.msra.mxu0 %v66
    %84 = vmatpush.msra.mxu0 %v65
    %85 = vmatpush.msra.mxu0 %v64
    %86 = vmatpush.msra.mxu0 %v63
    %87 = vmatpush.msra.mxu0 %v62
    %88 = vmatpush.msra.mxu0 %v61
    %89 = vmatpush.msra.mxu0 %v60
    %90 = vmatpush.msra.mxu0 %v59
    %91 = vmatmul.f32.gmra.mxu0 %v58
    %v92 = vpop.f32.mrf.mxu0
    %v93 = vadd.f32 0.0, %v92
    %94 = vdwg.mxu0
    %v95 = vmax.f32 %v93, 0.0
    %v96 = vld [vmem:[#allocation5] sm:$0xff]
    %v97 = vld [vmem:[#allocation5 + $0x8] sm:$0xff]
    %v98 = vld [vmem:[#allocation5 + $0x10] sm:$0xff]
    %v99 = vld [vmem:[#allocation5 + $0x18] sm:$0xff]
    %v100 = vld [vmem:[#allocation5 + $0x20] sm:$0xff]
    %v101 = vld [vmem:[#allocation5 + $0x28] sm:$0xff]
    %v102 = vld [vmem:[#allocation5 + $0x30] sm:$0xff]
    %v103 = vld [vmem:[#allocation5 + $0x38] sm:$0xff]
    %v104 = vld [vmem:[#allocation5 + $0x40] sm:$0xff]
    %v105 = vld [vmem:[#allocation5 + $0x48] sm:$0xff]
    %v106 = vld [vmem:[#allocation5 + $0x50] sm:$0xff]
    %v107 = vld [vmem:[#allocation5 + $0x58] sm:$0xff]
    %v108 = vld [vmem:[#allocation5 + $0x60] sm:$0xff]
    %v109 = vld [vmem:[#allocation5 + $0x68] sm:$0xff]
    %v110 = vld [vmem:[#allocation5 + $0x70] sm:$0xff]
    %v111 = vld [vmem:[#allocation5 + $0x78] sm:$0xff]
    %v112 = vld [vmem:[%s3] sm:$0x1]
    %v114 = vperm.slane %v112, 0
    %116 = vmatpush.msra.mxu0 %v111
    %117 = vmatpush.msra.mxu0 %v110
    %118 = vmatpush.msra.mxu0 %v109
    %119 = vmatpush.msra.mxu0 %v108
    %120 = vmatpush.msra.mxu0 %v107
    %121 = vmatpush.msra.mxu0 %v106
    %122 = vmatpush.msra.mxu0 %v105
    %123 = vmatpush.msra.mxu0 %v104
    %124 = vmatpush.msra.mxu0 %v103
    %125 = vmatpush.msra.mxu0 %v102
    %126 = vmatpush.msra.mxu0 %v101
    %127 = vmatpush.msra.mxu0 %v100
    %128 = vmatpush.msra.mxu0 %v99
    %129 = vmatpush.msra.mxu0 %v98
    %130 = vmatpush.msra.mxu0 %v97
    %131 = vmatpush.msra.mxu0 %v96
    %132 = vmatmul.f32.gmra.mxu0 %v95
    %v133 = vpop.f32.mrf.mxu0
    %v134 = vadd.f32 %v114, %v133
    %135 = vdwg.mxu0
    %136 = vmax.xlane.f32.xlu0 %v134
    %v137 = vpop.xlane.xlu0 %136
    %v138 = vsub.f32 %v134, %v137
    %v139 = vmul.f32 %v138, 1.442695
    %v140 = vpow.pop %v139
    %141 = vadd.xlane.f32.xlu0 %v140
    %v142 = vpop.xlane.xlu0 %141
    %v143 = vrcp.pop %v142
    %v144 = vmul.f32 %v142, %v143
    %v145 = vsub.f32 1.0, %v144
    %v146 = vmul.f32 %v143, %v145
    %v147 = vadd.f32 %v143, %v146
    %vm148 = vweird.f32 %v142
    %vm149 = vweird.f32 %v143
    %vm150 = vmor %vm148, %vm149
    %v151 = vsel %vm150, %v143, %v147
    %v152 = vand.u32 2147483647, %v142
    %vm153 = vcmp.eq.f32.partialorder %v152, 8.507059e+37
    %v154 = vand.u32 %v142, 2147483648
    %v155 = vor.u32 1.1754944e-38, %v154
    %v156 = vsel %vm153, %v155, %v151
    %v157 = vmul.f32 %v140, %v156
    %158 = vst [vmem:[#allocation7] sm:$0xff] %v157
    // Predicated region
    $region26: #{tpu_custom_call.1} parent=1 // pred_check
      _
    $region27: #{tpu_custom_call.1} parent=1 // pred_check_branch
      %160 = sbr.rel (0) target = $region29
    $region28: #{tpu_custom_call.1} parent=1 // pred_region
      %162 = vsyncadd [#allocation4], 0
      %s164 = sshll.u32 [#allocation7], 4
      %s165 = int_to_ptr.vmem [resolvable:$true] %s164
      %s166 = sshll.u32 %s4, 4
      %s167 = int_to_ptr.hbm [resolvable:$true] %s166
      %169 = dma.vmem_to_hbm [thread:$0]  %s165, 128, %s167, [#allocation4]
    $region29: #{tpu_custom_call.1} parent=1 // pred_fallthru
      _
    // Predicated region
    $region30: #{tpu_custom_call.1} parent=1 // pred_check
      _
    $region31: #{tpu_custom_call.1} parent=1 // pred_check_branch
      %171 = sbr.rel (0) target = $region33
    $region32: #{tpu_custom_call.1} parent=1 // pred_region
      %173 = dma.done [#allocation4], 128
    $region33: #{tpu_custom_call.1} parent=1 // pred_fallthru
      _
    %174 = vsyncpa [#allocation3], 1
    %175 = vsyncpa [#allocation6], 1
    %176 = vsyncpa [#allocation4], 1

</llo_original>
